<compile_context>
chip_gen: v6e
topology: v6e:2x2x1
jax: 0.10.0
libtpu: 0.0.40
codegen_flags: <defaults>
</compile_context>

<pallas_src>
import functools

import jax
import jax.numpy as jnp
from jax.experimental import pallas as pl
from jax.experimental.pallas import tpu as pltpu

_LANE = 128
_MIN_PIPELINE_BYTES = 1 << 20   # force >= _MIN_STEPS grid steps above this size
_MIN_STEPS = 4                  # >= 2x TensorCores on v7x; gives pipeline overlap


def _device_block_config():
    """Per-generation block-size / scoped-VMEM budget (safe fallback: 4 MiB / 32 MiB)."""
    target_bytes = 4 << 20      # 4 MiB block: 4x double-buffered = 16 MiB
    vmem_limit = 32 << 20       # fine on v5e (128 MiB phys), v6e (128), v7x (64)
    try:
        kind = jax.devices()[0].device_kind.lower()
    except Exception:
        kind = ""
    if "v7" in kind or "7x" in kind:
        # 3.2 TB/s HBM: bigger blocks to amortize per-step overhead; stay well
        # under v7x's 64 MiB physical VMEM (4 x 8 MiB = 32 MiB + headroom).
        target_bytes = 8 << 20
        vmem_limit = 40 << 20
    return target_bytes, vmem_limit


_BLOCK_BYTES_TARGET, _VMEM_LIMIT_BYTES = _device_block_config()


def _make_kernel(od, i_sat, encoding):
    """Elementwise kernel with OD / I_sat folded in as constants."""
    neg_od = float(-od)
    neg_half_od = float(-0.5 * od)
    inv_i_sat = float(1.0 / i_sat)

    def _recip(denom):
        # EUP approx reciprocal + one f32 Newton step (~f32-exact, keeps the
        # kernel memory-bound instead of EUP-bound on v7x).
        r = pl.reciprocal(denom, approx=True)
        return r * (2.0 - denom * r)

    if encoding == "intensity":
        def kernel(x_ref, o_ref):
            x = x_ref[...].astype(jnp.float32)
            denom = 1.0 + x * inv_i_sat
            o_ref[...] = (x * jnp.exp(neg_od * _recip(denom))).astype(o_ref.dtype)
    elif encoding == "amplitude":
        def kernel(x_ref, o_ref):
            x = x_ref[...].astype(jnp.float32)
            denom = 1.0 + (x * x) * inv_i_sat
            o_ref[...] = (x * jnp.exp(neg_half_od * _recip(denom))).astype(o_ref.dtype)
    else:
        raise ValueError(f"unknown encoding: {encoding}")
    return kernel


def _jnp_forward(x, od, i_sat, encoding, out_dtype):
    """Plain-JAX path for tiny / ragged tails (< 128 elements)."""
    xf = x.astype(jnp.float32)
    if encoding == "intensity":
        y = xf * jnp.exp(-od / (1.0 + xf / i_sat))
    else:
        y = xf * jnp.exp(-(od / 2.0) / (1.0 + xf * xf / i_sat))
    return y.astype(out_dtype)


def _run_kernel_flat(flat, od, i_sat, encoding):
    """Run the Pallas kernel on a 1-D array whose length is a multiple of 128."""
    n = flat.shape[0]
    dtype = flat.dtype
    itemsize = jnp.dtype(dtype).itemsize

    # Widest lane-dense width W (multiple of 128) that divides n -> free reshape.
    w = _LANE
    for cand in (16384, 8192, 4096, 2048, 1024, 512, 256):
        if n % cand == 0:
            w = cand
            break
    rows = n // w
    x2d = flat.reshape(rows, w)

    # Row block sized to the per-chip byte budget; multiple of 32 when possible
    # so sub-32-bit dtypes keep packed (unmasked) loads/stores.
    row_bytes = w * itemsize
    target_rows = max(8, _BLOCK_BYTES_TARGET // row_bytes)
    if target_rows >= 32:
        target_rows -= target_rows % 32

    total_bytes = n * itemsize
    if rows <= target_rows:
        if total_bytes <= _MIN_PIPELINE_BYTES or rows < 16:
            # Tiny input: a single full-extent block (overhead-dominated anyway).
            block_rows = rows
        else:
            # Never collapse to one grid step on medium inputs: keep >= ~4 steps
            # so both TCs (v7x) and the DMA pipeline stay busy.
            br = pl.cdiv(rows, _MIN_STEPS)
            block_rows = max(8, ((br + 7) // 8) * 8)
    else:
        block_rows = target_rows

    grid = (pl.cdiv(rows, block_rows),)
    kernel = _make_kernel(od, i_sat, encoding)

    out2d = pl.pallas_call(
        kernel,
        out_shape=jax.ShapeDtypeStruct((rows, w), dtype),
        grid=grid,
        in_specs=[pl.BlockSpec((block_rows, w), lambda i: (i, 0))],
        out_specs=pl.BlockSpec((block_rows, w), lambda i: (i, 0)),
        compiler_params=pltpu.CompilerParams(
            dimension_semantics=("parallel",),
            vmem_limit_bytes=_VMEM_LIMIT_BYTES),
        cost_estimate=pl.CostEstimate(
            flops=6 * n,
            transcendentals=2 * n,
            bytes_accessed=2 * n * itemsize),
    )(x2d)
    return out2d.reshape(-1)


@functools.partial(jax.jit, static_argnames=("od", "i_sat", "encoding"))
def sat_abs_nl(x, od=5.0, i_sat=1.0, encoding="intensity"):
    """Pallas implementation of SatAbsNL.forward for any-shape float input."""
    orig_shape = x.shape
    orig_dtype = x.dtype
    n = x.size
    if n == 0:
        return x

    flat = x.reshape(-1)
    n_tail = n % _LANE
    n_main = n - n_tail

    if n_main == 0:
        # Fewer than 128 elements: not worth a kernel launch.
        return _jnp_forward(flat, od, i_sat, encoding, orig_dtype).reshape(orig_shape)

    main = flat if n_tail == 0 else flat[:n_main]
    out_main = _run_kernel_flat(main, od, i_sat, encoding)
    if n_tail == 0:
        return out_main.reshape(orig_shape)

    # Ragged tail (< 128 elements) handled with plain jnp; avoids full-array
    # pad + slice (which would cost ~2 extra HBM passes on the whole tensor).
    out_tail = _jnp_forward(flat[n_main:], od, i_sat, encoding, orig_dtype)
    return jnp.concatenate([out_main, out_tail]).reshape(orig_shape)


def sat_abs_nl_ref(x, od, i_sat, encoding="intensity"):
    x = x.astype(jnp.float32)
    if encoding == "intensity":
        return x * jnp.exp(-od / (1.0 + x / i_sat))
    return x * jnp.exp(-(od / 2.0) / (1.0 + x * x / i_sat))


if __name__ == "__main__":
    key = jax.random.PRNGKey(0)
    # Module default config: encoding=INTENSITY, gradient=APPROXIMATE, OD=5, I_sat=1.
    OD = 5.0
    I_SAT = 1.0

    # NCHW activations, small shape (batch=2, channels=4, spatial=16x16).
    x = jax.random.uniform(key, (2, 4, 16, 16), dtype=jnp.float32) * 2.0

    out = jax.block_until_ready(sat_abs_nl(x, OD, I_SAT, encoding="intensity"))
    ref = sat_abs_nl_ref(x, OD, I_SAT, encoding="intensity")
    assert out.shape == x.shape and out.dtype == x.dtype
    assert jnp.max(jnp.abs(out - ref)) < 1e-5, "mismatch vs reference (intensity)"

    # AMPLITUDE encoding path.
    out_e = jax.block_until_ready(sat_abs_nl(x, OD, I_SAT, encoding="amplitude"))
    ref_e = sat_abs_nl_ref(x, OD, I_SAT, encoding="amplitude")
    assert out_e.shape == x.shape and out_e.dtype == x.dtype
    assert jnp.max(jnp.abs(out_e - ref_e)) < 1e-5, "mismatch vs reference (amplitude)"

    # Ragged element count (390 = 3*128 + 6): kernel on aligned prefix + jnp tail.
    key2 = jax.random.PRNGKey(1)
    xr = jax.random.uniform(key2, (130, 3), dtype=jnp.float32) * 2.0
    out_r = jax.block_until_ready(sat_abs_nl(xr, OD, I_SAT, encoding="intensity"))
    ref_r = sat_abs_nl_ref(xr, OD, I_SAT, encoding="intensity")
    assert out_r.shape == xr.shape
    assert jnp.max(jnp.abs(out_r - ref_r)) < 1e-5, "mismatch vs reference (ragged)"

    # Medium input (> 1 MiB) to exercise the multi-step pipelined path.
    key3 = jax.random.PRNGKey(2)
    xm = jax.random.uniform(key3, (640, 512), dtype=jnp.float32) * 2.0
    out_m = jax.block_until_ready(sat_abs_nl(xm, OD, I_SAT, encoding="intensity"))
    ref_m = sat_abs_nl_ref(xm, OD, I_SAT, encoding="intensity")
    assert jnp.max(jnp.abs(out_m - ref_m)) < 1e-5, "mismatch vs reference (medium)"

    print("KERNEL_OK")
</pallas_src>

<mosaic_0001>
module attributes {stable_mosaic.version = 11 : i64} {
  func.func @kernel(%arg0: i32, %arg1: memref<1x2048xf32, #tpu.memory_space<vmem>>, %arg2: memref<1x2048xf32, #tpu.memory_space<vmem>>) attributes {dimension_semantics = [#tpu.dimension_semantics<parallel>], iteration_bounds = array<i64: 1>, scalar_prefetch = 0 : i64, scratch_operands = 0 : i64, tpu.core_type = #tpu.core_type<tc>, window_params = [{transform_indices = @transform_0, window_bounds = array<i64: 1, 2048>}, {transform_indices = @transform_1, window_bounds = array<i64: 1, 2048>}]} {
    %c0 = arith.constant 0 : index
    %c0_0 = arith.constant 0 : index
    %0 = vector.load %arg1[%c0, %c0_0] : memref<1x2048xf32, #tpu.memory_space<vmem>>, vector<1x2048xf32>
    %cst = arith.constant 1.000000e+00 : f32
    %1 = vector.broadcast %cst : f32 to vector<1x2048xf32>
    %2 = arith.mulf %0, %1 : vector<1x2048xf32>
    %cst_1 = arith.constant 1.000000e+00 : f32
    %3 = vector.broadcast %cst_1 : f32 to vector<1x2048xf32>
    %4 = arith.addf %3, %2 : vector<1x2048xf32>
    %5 = tpu.reciprocal %4 {approx = true} : vector<1x2048xf32> -> vector<1x2048xf32>
    %6 = arith.mulf %4, %5 : vector<1x2048xf32>
    %cst_2 = arith.constant 2.000000e+00 : f32
    %7 = vector.broadcast %cst_2 : f32 to vector<1x2048xf32>
    %8 = arith.subf %7, %6 : vector<1x2048xf32>
    %9 = arith.mulf %5, %8 : vector<1x2048xf32>
    %cst_3 = arith.constant -5.000000e+00 : f32
    %10 = vector.broadcast %cst_3 : f32 to vector<1x2048xf32>
    %11 = arith.mulf %10, %9 : vector<1x2048xf32>
    %12 = math.exp %11 : vector<1x2048xf32>
    %13 = arith.mulf %0, %12 : vector<1x2048xf32>
    %c0_4 = arith.constant 0 : index
    %c0_5 = arith.constant 0 : index
    %14 = vector.load %arg2[%c0_4, %c0_5] : memref<1x2048xf32, #tpu.memory_space<vmem>>, vector<1x2048xf32>
    tpu.vector_store %arg2[%c0_4, %c0_5], %13 {strides = array<i32>} : memref<1x2048xf32, #tpu.memory_space<vmem>>, vector<1x2048xf32>,
    return
  }
  func.func @transform_0(%arg0: i32) -> (i32, i32) {
    %c0_i32 = arith.constant 0 : i32
    %c0_i32_0 = arith.constant 0 : i32
    return %arg0, %c0_i32 : i32, i32
  }
  func.func @transform_1(%arg0: i32) -> (i32, i32) {
    %c0_i32 = arith.constant 0 : i32
    %c0_i32_0 = arith.constant 0 : i32
    return %arg0, %c0_i32 : i32, i32
  }
}

</mosaic_0001>

<llo_original>
// kernel: sat_abs_nl.1
$region0: #{sat_abs_nl.1}
  #allocation0 [shape = 'u32[]', space=smem, size = 0x4, offset = 0x4, fixed_abs, tag = 'smem constant byte address 0x4 - core index']
  #allocation1 [shape = 'u32[144,128]{1,0:T(1,128)}', space=vmem, size = 0x12000, scoped, tag = 'internal scratch']
  %s0 = inlined_call_operand.vmem [shape: f32[1,2048], index: 0, kind: input, shape index: {}]
  %s1 = inlined_call_operand.vmem [shape: f32[1,2048], index: 1, kind: output, shape index: {}]
  %s2 = sld [smem:[#allocation0]]
  $region14: #{sat_abs_nl.1} parent=0
    _
  %s4 = ssub.s32 1, %s2
  %s5 = scalar_select 0, %s4, %s2
  // Predicated region
  $region2: #{sat_abs_nl.1} parent=0 // pred_check
    _
  $region3: #{sat_abs_nl.1} parent=0 // pred_check_branch
    %7 = sbr.rel (0) target = $region5
  $region4: #{sat_abs_nl.1} parent=0 // pred_region
    _
  $region5: #{sat_abs_nl.1} parent=0 // pred_fallthru
    _
  %v8 = vld [vmem:[%s0] sm:$0xff]
  %v9 = vld [vmem:[%s0 + $0x8] sm:$0xff]
  %v10 = vadd.f32 %v8, 1.0
  %v11 = vadd.f32 %v9, 1.0
  %v12 = vrcp.pop %v10
  %v13 = vrcp.pop %v11
  %v14 = vmul.f32 %v10, %v12
  %v15 = vmul.f32 %v11, %v13
  %v16 = vsub.f32 2.0, %v14
  %v17 = vsub.f32 2.0, %v15
  %v18 = vmul.f32 %v12, %v16
  %v19 = vmul.f32 %v13, %v17
  %v20 = vmul.f32 %v18, -5.0
  %v21 = vmul.f32 %v19, -5.0
  %v22 = vmul.f32 %v20, 1.442695
  %v23 = vpow.pop %v22
  %v24 = vmul.f32 %v21, 1.442695
  %v25 = vpow.pop %v24
  %v26 = vmul.f32 %v8, %v23
  %v27 = vmul.f32 %v9, %v25
  %28 = vst [vmem:[%s1] sm:$0xff] %v26
  %29 = vst [vmem:[%s1 + $0x8] sm:$0xff] %v27
  // Predicated region
  $region6: #{sat_abs_nl.1} parent=0 // pred_check
    _
  $region7: #{sat_abs_nl.1} parent=0 // pred_check_branch
    %31 = sbr.rel (0) target = $region9
  $region8: #{sat_abs_nl.1} parent=0 // pred_region
    _
  $region9: #{sat_abs_nl.1} parent=0 // pred_fallthru
    _
  // Predicated region
  $region10: #{sat_abs_nl.1} parent=0 // pred_check
    _
  $region11: #{sat_abs_nl.1} parent=0 // pred_check_branch
    %33 = sbr.rel (0) target = $region13
  $region12: #{sat_abs_nl.1} parent=0 // pred_region
    _
  $region13: #{sat_abs_nl.1} parent=0 // pred_fallthru
    _

</llo_original>
